<compile_context>
chip_gen: v7x
topology: tpu7x:2x2x1
jax: 0.10.0
libtpu: 0.0.40
codegen_flags: <defaults>
</compile_context>

<pallas_src>
import jax
import jax.numpy as jnp
import numpy as np
from jax import lax
from jax.experimental import pallas as pl
from jax.experimental.pallas import tpu as pltpu  # noqa: F401  (TPU backend)


def hinge_loss_kernel(ids_col_ref, ids_row_ref, feats_ref, out_ref):
    feats = feats_ref[...].astype(jnp.float32)       # (B, F)
    ids_col = ids_col_ref[...]                       # (B, 1) int32
    ids_row = ids_row_ref[...]                       # (1, B) int32
    B = feats.shape[0]

    # --- cosine similarity matrix cos[i, j] (symmetric), EUP rsqrt norm ---
    sq = jnp.sum(feats * feats, axis=1, keepdims=True)            # (B, 1)
    fn = feats * lax.rsqrt(sq + 1e-8)                             # (B, F)
    cos = lax.dot_general(fn, fn, (((1,), (1,)), ((), ())),
                          preferred_element_type=jnp.float32)     # (B, B)

    # --- masks / margins, all hoisted out of the loop (symmetric) ---------
    eq = ids_col == ids_row                                       # (B, B)
    row_idx = lax.broadcasted_iota(jnp.int32, (B, B), 0)
    col_idx = lax.broadcasted_iota(jnp.int32, (B, B), 1)
    eye = row_idx == col_idx
    sim_mask = jnp.logical_and(eq, jnp.logical_not(eye))          # same id, j != i
    dif_mask = jnp.logical_not(eq)                                # different id
    margin = 0.15 * jnp.abs(ids_col.astype(jnp.float32)
                            - ids_row.astype(jnp.float32))        # (B, B)

    # Fold the pair masks into the operands so the loop body is mask-free:
    #   a_m[i, d]   = margin[i, d] + cos[i, d]  if ids differ,     else -BIG
    #   cos_m[i, s] = cos[i, s]                 if same id (s!=i), else +BIG
    # => relu(a_m - cos_m) is exactly 0 for every excluded (s, d) pair.
    BIG = jnp.float32(1e30)
    a_m = jnp.where(dif_mask, margin + cos, -BIG)                 # (B, B) [i, d]
    cos_m = jnp.where(sim_mask, cos, BIG)                         # (B, B) [i, s]

    # --- per-anchor numerators, vectorized over anchors -------------------
    # acc[i, d] = sum_s relu(a_m[i, d] - cos_m[i, s]); B is small & static,
    # so the loop is unrolled; only sub/relu/add per iter, one reduce at end.
    acc = jnp.zeros((B, B), jnp.float32)
    for s in range(B):
        acc = acc + jnp.maximum(a_m - cos_m[:, s:s + 1], 0.0)
    num = jnp.sum(acc, axis=1, keepdims=True)                     # (B, 1)

    # --- hoisted pair counts, one vector divide, one final reduce ---------
    s_cnt = jnp.sum(sim_mask.astype(jnp.float32), axis=1, keepdims=True)  # (B, 1)
    d_cnt = jnp.sum(dif_mask.astype(jnp.float32), axis=1, keepdims=True)  # (B, 1)
    valid = jnp.logical_and(s_cnt > 0.0, d_cnt > 0.0)             # (B, 1)
    per = jnp.where(valid, num / jnp.maximum(s_cnt * d_cnt, 1.0), 0.0)
    loss_sum = jnp.sum(per, axis=0, keepdims=True)                # (1, 1)
    n_valid = jnp.sum(valid.astype(jnp.float32), axis=0, keepdims=True)
    out_ref[...] = loss_sum / jnp.maximum(n_valid, 1.0)


def hinge_loss(ids, feats):
    """ids: (B,) int, feats: (B, F) float32 -> scalar f32 loss."""
    B, _ = feats.shape
    ids_i = ids.astype(jnp.int32)
    ids_col = ids_i.reshape(B, 1)
    ids_row = ids_i.reshape(1, B)
    out = pl.pallas_call(
        hinge_loss_kernel,
        out_shape=jax.ShapeDtypeStruct((1, 1), jnp.float32),
    )(ids_col, ids_row, feats)
    return out[0, 0]


def hinge_ref(ids, feats):
    """Pure numpy reference mirroring the PyTorch forward."""
    ids = np.asarray(ids)
    feats = np.asarray(feats, dtype=np.float64)
    B, _ = feats.shape
    n = np.maximum(np.sqrt((feats ** 2).sum(1) + 1e-8), 1e-8)
    cos = (feats @ feats.T) / (n[:, None] * n[None, :])
    loss, cnt = 0.0, 0
    for i in range(B):
        sims, difs = [], []
        for j in range(B):
            if j == i:
                continue
            if ids[i] == ids[j]:
                sims.append(cos[i, j])
            else:
                difs.append((cos[i, j], 0.15 * abs(float(ids[i]) - float(ids[j]))))
        if not sims or not difs:
            continue
        acc = 0.0
        for cs in sims:
            for cd, m in difs:
                acc += max(0.0, m - cs + cd)
        loss += acc / (len(sims) * len(difs))
        cnt += 1
    if cnt == 0:
        cnt = 1
    return loss / cnt


if __name__ == "__main__":
    key = jax.random.PRNGKey(0)
    k1, k2 = jax.random.split(key)
    B, Fdim = 8, 32
    ids = jax.random.randint(k1, (B,), 0, 4, dtype=jnp.int32)
    feats = jax.random.normal(k2, (B, Fdim), dtype=jnp.float32)

    loss = hinge_loss(ids, feats)
    jax.block_until_ready(loss)

    ref = hinge_ref(np.array(ids), np.array(feats))
    assert abs(float(loss) - float(ref)) < 1e-4, (float(loss), float(ref))
    print("KERNEL_OK")
</pallas_src>

<mosaic_0001>
module attributes {stable_mosaic.version = 11 : i64} {
  func.func @hinge_loss_kernel(%arg0: memref<8x1xi32, #tpu.memory_space<vmem>>, %arg1: memref<1x8xi32, #tpu.memory_space<vmem>>, %arg2: memref<8x32xf32, #tpu.memory_space<vmem>>, %arg3: memref<1x1xf32, #tpu.memory_space<vmem>>) attributes {dimension_semantics = [], scalar_prefetch = 0 : i64, scratch_operands = 0 : i64, tpu.core_type = #tpu.core_type<tc>} {
    %c0 = arith.constant 0 : index
    %c0_0 = arith.constant 0 : index
    %0 = vector.load %arg2[%c0, %c0_0] : memref<8x32xf32, #tpu.memory_space<vmem>>, vector<8x32xf32>
    %c0_1 = arith.constant 0 : index
    %c0_2 = arith.constant 0 : index
    %1 = vector.load %arg0[%c0_1, %c0_2] : memref<8x1xi32, #tpu.memory_space<vmem>>, vector<8x1xi32>
    %c0_3 = arith.constant 0 : index
    %c0_4 = arith.constant 0 : index
    %2 = vector.load %arg1[%c0_3, %c0_4] : memref<1x8xi32, #tpu.memory_space<vmem>>, vector<1x8xi32>
    %3 = arith.mulf %0, %0 : vector<8x32xf32>
    %cst = arith.constant dense<0.000000e+00> : vector<8xf32>
    %4 = vector.multi_reduction <add>, %3, %cst [1] : vector<8x32xf32> to vector<8xf32>
    %5 = vector.shape_cast %4 : vector<8xf32> to vector<8x1xf32>
    %cst_5 = arith.constant 9.99999993E-9 : f32
    %6 = vector.broadcast %cst_5 : f32 to vector<8x1xf32>
    %7 = arith.addf %5, %6 : vector<8x1xf32>
    %8 = math.rsqrt %7 : vector<8x1xf32>
    %9 = vector.broadcast %8 : vector<8x1xf32> to vector<8x32xf32>
    %10 = arith.mulf %0, %9 : vector<8x32xf32>
    %cst_6 = arith.constant dense<0.000000e+00> : vector<8x8xf32>
    %11 = tpu.matmul %10, %10, %cst_6 {dimension_numbers = #tpu.dot_dimension_numbers<[1], [1], [0], [0], [0, 0, 1, 0], [], []>} : vector<8x32xf32>, vector<8x32xf32>, vector<8x8xf32> -> vector<8x8xf32>
    %12 = vector.broadcast %1 : vector<8x1xi32> to vector<8x8xi32>
    %13 = vector.broadcast %2 : vector<1x8xi32> to vector<8x8xi32>
    %14 = arith.cmpi eq, %12, %13 : vector<8x8xi32>
    %15 = tpu.iota {dimensions = array<i32: 0>} : vector<8x8xi32>
    %16 = tpu.iota {dimensions = array<i32: 1>} : vector<8x8xi32>
    %17 = arith.cmpi eq, %15, %16 : vector<8x8xi32>
    %cst_7 = arith.constant dense<true> : vector<8x8xi1>
    %18 = arith.xori %17, %cst_7 : vector<8x8xi1>
    %19 = arith.andi %14, %18 : vector<8x8xi1>
    %cst_8 = arith.constant dense<true> : vector<8x8xi1>
    %20 = arith.xori %14, %cst_8 : vector<8x8xi1>
    %21 = arith.sitofp %1 : vector<8x1xi32> to vector<8x1xf32>
    %22 = arith.sitofp %2 : vector<1x8xi32> to vector<1x8xf32>
    %23 = vector.broadcast %21 : vector<8x1xf32> to vector<8x8xf32>
    %24 = vector.broadcast %22 : vector<1x8xf32> to vector<8x8xf32>
    %25 = arith.subf %23, %24 : vector<8x8xf32>
    %26 = math.absf %25 : vector<8x8xf32>
    %cst_9 = arith.constant 1.500000e-01 : f32
    %27 = vector.broadcast %cst_9 : f32 to vector<8x8xf32>
    %28 = arith.mulf %27, %26 : vector<8x8xf32>
    %29 = arith.addf %28, %11 : vector<8x8xf32>
    %cst_10 = arith.constant 0.000000e+00 : f32
    %cst_11 = arith.constant 1.000000e+30 : f32
    %30 = arith.subf %cst_10, %cst_11 : f32
    %31 = vector.broadcast %30 : f32 to vector<8x8xf32>
    %32 = arith.select %20, %29, %31 : vector<8x8xi1>, vector<8x8xf32>
    %cst_12 = arith.constant 1.000000e+30 : f32
    %33 = vector.broadcast %cst_12 : f32 to vector<8x8xf32>
    %34 = arith.select %19, %11, %33 : vector<8x8xi1>, vector<8x8xf32>
    %cst_13 = arith.constant 0.000000e+00 : f32
    %35 = vector.broadcast %cst_13 : f32 to vector<8x8xf32>
    %36 = vector.extract_strided_slice %34 {offsets = [0, 0], sizes = [8, 1], strides = [1, 1]} : vector<8x8xf32> to vector<8x1xf32>
    %37 = vector.broadcast %36 : vector<8x1xf32> to vector<8x8xf32>
    %38 = arith.subf %32, %37 : vector<8x8xf32>
    %cst_14 = arith.constant 0.000000e+00 : f32
    %39 = vector.broadcast %cst_14 : f32 to vector<8x8xf32>
    %40 = arith.maximumf %38, %39 : vector<8x8xf32>
    %41 = arith.addf %35, %40 : vector<8x8xf32>
    %42 = vector.extract_strided_slice %34 {offsets = [0, 1], sizes = [8, 1], strides = [1, 1]} : vector<8x8xf32> to vector<8x1xf32>
    %43 = vector.broadcast %42 : vector<8x1xf32> to vector<8x8xf32>
    %44 = arith.subf %32, %43 : vector<8x8xf32>
    %cst_15 = arith.constant 0.000000e+00 : f32
    %45 = vector.broadcast %cst_15 : f32 to vector<8x8xf32>
    %46 = arith.maximumf %44, %45 : vector<8x8xf32>
    %47 = arith.addf %41, %46 : vector<8x8xf32>
    %48 = vector.extract_strided_slice %34 {offsets = [0, 2], sizes = [8, 1], strides = [1, 1]} : vector<8x8xf32> to vector<8x1xf32>
    %49 = vector.broadcast %48 : vector<8x1xf32> to vector<8x8xf32>
    %50 = arith.subf %32, %49 : vector<8x8xf32>
    %cst_16 = arith.constant 0.000000e+00 : f32
    %51 = vector.broadcast %cst_16 : f32 to vector<8x8xf32>
    %52 = arith.maximumf %50, %51 : vector<8x8xf32>
    %53 = arith.addf %47, %52 : vector<8x8xf32>
    %54 = vector.extract_strided_slice %34 {offsets = [0, 3], sizes = [8, 1], strides = [1, 1]} : vector<8x8xf32> to vector<8x1xf32>
    %55 = vector.broadcast %54 : vector<8x1xf32> to vector<8x8xf32>
    %56 = arith.subf %32, %55 : vector<8x8xf32>
    %cst_17 = arith.constant 0.000000e+00 : f32
    %57 = vector.broadcast %cst_17 : f32 to vector<8x8xf32>
    %58 = arith.maximumf %56, %57 : vector<8x8xf32>
    %59 = arith.addf %53, %58 : vector<8x8xf32>
    %60 = vector.extract_strided_slice %34 {offsets = [0, 4], sizes = [8, 1], strides = [1, 1]} : vector<8x8xf32> to vector<8x1xf32>
    %61 = vector.broadcast %60 : vector<8x1xf32> to vector<8x8xf32>
    %62 = arith.subf %32, %61 : vector<8x8xf32>
    %cst_18 = arith.constant 0.000000e+00 : f32
    %63 = vector.broadcast %cst_18 : f32 to vector<8x8xf32>
    %64 = arith.maximumf %62, %63 : vector<8x8xf32>
    %65 = arith.addf %59, %64 : vector<8x8xf32>
    %66 = vector.extract_strided_slice %34 {offsets = [0, 5], sizes = [8, 1], strides = [1, 1]} : vector<8x8xf32> to vector<8x1xf32>
    %67 = vector.broadcast %66 : vector<8x1xf32> to vector<8x8xf32>
    %68 = arith.subf %32, %67 : vector<8x8xf32>
    %cst_19 = arith.constant 0.000000e+00 : f32
    %69 = vector.broadcast %cst_19 : f32 to vector<8x8xf32>
    %70 = arith.maximumf %68, %69 : vector<8x8xf32>
    %71 = arith.addf %65, %70 : vector<8x8xf32>
    %72 = vector.extract_strided_slice %34 {offsets = [0, 6], sizes = [8, 1], strides = [1, 1]} : vector<8x8xf32> to vector<8x1xf32>
    %73 = vector.broadcast %72 : vector<8x1xf32> to vector<8x8xf32>
    %74 = arith.subf %32, %73 : vector<8x8xf32>
    %cst_20 = arith.constant 0.000000e+00 : f32
    %75 = vector.broadcast %cst_20 : f32 to vector<8x8xf32>
    %76 = arith.maximumf %74, %75 : vector<8x8xf32>
    %77 = arith.addf %71, %76 : vector<8x8xf32>
    %78 = vector.extract_strided_slice %34 {offsets = [0, 7], sizes = [8, 1], strides = [1, 1]} : vector<8x8xf32> to vector<8x1xf32>
    %79 = vector.broadcast %78 : vector<8x1xf32> to vector<8x8xf32>
    %80 = arith.subf %32, %79 : vector<8x8xf32>
    %cst_21 = arith.constant 0.000000e+00 : f32
    %81 = vector.broadcast %cst_21 : f32 to vector<8x8xf32>
    %82 = arith.maximumf %80, %81 : vector<8x8xf32>
    %83 = arith.addf %77, %82 : vector<8x8xf32>
    %cst_22 = arith.constant dense<0.000000e+00> : vector<8xf32>
    %84 = vector.multi_reduction <add>, %83, %cst_22 [1] : vector<8x8xf32> to vector<8xf32>
    %85 = vector.shape_cast %84 : vector<8xf32> to vector<8x1xf32>
    %86 = arith.extui %19 : vector<8x8xi1> to vector<8x8xi32>
    %87 = arith.sitofp %86 : vector<8x8xi32> to vector<8x8xf32>
    %cst_23 = arith.constant dense<0.000000e+00> : vector<8xf32>
    %88 = vector.multi_reduction <add>, %87, %cst_23 [1] : vector<8x8xf32> to vector<8xf32>
    %89 = vector.shape_cast %88 : vector<8xf32> to vector<8x1xf32>
    %90 = arith.extui %20 : vector<8x8xi1> to vector<8x8xi32>
    %91 = arith.sitofp %90 : vector<8x8xi32> to vector<8x8xf32>
    %cst_24 = arith.constant dense<0.000000e+00> : vector<8xf32>
    %92 = vector.multi_reduction <add>, %91, %cst_24 [1] : vector<8x8xf32> to vector<8xf32>
    %93 = vector.shape_cast %92 : vector<8xf32> to vector<8x1xf32>
    %cst_25 = arith.constant 0.000000e+00 : f32
    %94 = vector.broadcast %cst_25 : f32 to vector<8x1xf32>
    %95 = arith.cmpf ogt, %89, %94 : vector<8x1xf32>
    %cst_26 = arith.constant 0.000000e+00 : f32
    %96 = vector.broadcast %cst_26 : f32 to vector<8x1xf32>
    %97 = arith.cmpf ogt, %93, %96 : vector<8x1xf32>
    %98 = arith.andi %95, %97 : vector<8x1xi1>
    %99 = arith.mulf %89, %93 : vector<8x1xf32>
    %cst_27 = arith.constant 1.000000e+00 : f32
    %100 = vector.broadcast %cst_27 : f32 to vector<8x1xf32>
    %101 = arith.maximumf %99, %100 : vector<8x1xf32>
    %102 = arith.divf %85, %101 : vector<8x1xf32>
    %cst_28 = arith.constant 0.000000e+00 : f32
    %103 = vector.broadcast %cst_28 : f32 to vector<8x1xf32>
    %104 = arith.select %98, %102, %103 : vector<8x1xi1>, vector<8x1xf32>
    %cst_29 = arith.constant dense<0.000000e+00> : vector<1xf32>
    %105 = vector.multi_reduction <add>, %104, %cst_29 [0] : vector<8x1xf32> to vector<1xf32>
    %106 = vector.shape_cast %105 : vector<1xf32> to vector<1x1xf32>
    %107 = arith.extui %98 : vector<8x1xi1> to vector<8x1xi32>
    %108 = arith.sitofp %107 : vector<8x1xi32> to vector<8x1xf32>
    %cst_30 = arith.constant dense<0.000000e+00> : vector<1xf32>
    %109 = vector.multi_reduction <add>, %108, %cst_30 [0] : vector<8x1xf32> to vector<1xf32>
    %110 = vector.shape_cast %109 : vector<1xf32> to vector<1x1xf32>
    %cst_31 = arith.constant 1.000000e+00 : f32
    %111 = vector.broadcast %cst_31 : f32 to vector<1x1xf32>
    %112 = arith.maximumf %110, %111 : vector<1x1xf32>
    %113 = arith.divf %106, %112 : vector<1x1xf32>
    %c0_32 = arith.constant 0 : index
    %c0_33 = arith.constant 0 : index
    %114 = vector.load %arg3[%c0_32, %c0_33] : memref<1x1xf32, #tpu.memory_space<vmem>>, vector<1x1xf32>
    tpu.vector_store %arg3[%c0_32, %c0_33], %113 {strides = array<i32>} : memref<1x1xf32, #tpu.memory_space<vmem>>, vector<1x1xf32>,
    return
  }
}

</mosaic_0001>

<llo_original>
// kernel: tpu_custom_call.1
$region0: #{tpu_custom_call.1}
  #allocation0 [shape = 'u32[]', space=smem, size = 0x4, offset = 0x4, fixed_abs, tag = 'smem constant byte address 0x4 - core index']
  #allocation1 [shape = 'u32[144,128]{1,0:T(1,128)}', space=vmem, size = 0x12000, scoped, tag = 'internal scratch']
  %s0 = inlined_call_operand.vmem [shape: s32[8,1], index: 0, kind: input, shape index: {}]
  %s1 = inlined_call_operand.vmem [shape: s32[1,8], index: 1, kind: input, shape index: {}]
  %s2 = inlined_call_operand.vmem [shape: f32[8,32], index: 2, kind: input, shape index: {}]
  %s3 = inlined_call_operand.hbm [shape: f32[1,1], index: 3, kind: output, shape index: {}]
  %s4 = sld [smem:[#allocation0]]
  $region22: #{tpu_custom_call.1} parent=0
    _
  %s6 = ssub.s32 1, %s4
  %s7 = scalar_select 0, %s6, %s4
  $region1: #{tpu_custom_call.1} parent=0
    #allocation2 [shape = 'u8[512]{0}', space=vmem, size = 0x400, scoped, tag = 'output window, operand 0, single buffered']
    #allocation3 [shape = 's32[1]{0}', space=sflag, size = 0x4, scoped, tag = 'scoped memory for tpu_custom_call.1']
    %8 = vsyncpa [#allocation3], 0
    // Predicated region
    $region2: #{tpu_custom_call.1} parent=1 // pred_check
      _
    $region3: #{tpu_custom_call.1} parent=1 // pred_check_branch
      %10 = sbr.rel (0) target = $region5
    $region4: #{tpu_custom_call.1} parent=1 // pred_region
      _
    $region5: #{tpu_custom_call.1} parent=1 // pred_fallthru
      _
    // Predicated region
    $region6: #{tpu_custom_call.1} parent=1 // pred_check
      _
    $region7: #{tpu_custom_call.1} parent=1 // pred_check_branch
      %12 = sbr.rel (0) target = $region9
    $region8: #{tpu_custom_call.1} parent=1 // pred_region
      _
    $region9: #{tpu_custom_call.1} parent=1 // pred_fallthru
      _
    // Predicated region
    $region10: #{tpu_custom_call.1} parent=1 // pred_check
      _
    $region11: #{tpu_custom_call.1} parent=1 // pred_check_branch
      %14 = sbr.rel (0) target = $region13
    $region12: #{tpu_custom_call.1} parent=1 // pred_region
      _
    $region13: #{tpu_custom_call.1} parent=1 // pred_fallthru
      _
    %v15 = vld [vmem:[%s2] sm:$0xff]
    %v16 = vld [vmem:[%s0] sm:$0xff]
    %v17 = vld [vmem:[%s1] sm:$0x1]
    %v18 = vmul.f32 %v15, %v15
    %vm19 = vcmask 261120
    %v20 = vsel %vm19, %v18, 0.0
    %21 = vadd.xlane.f32.xlu0 %v20
    %v22 = vpop.xlane.xlu0 %21
    %v23 = vadd.f32 %v22, 1e-08
    %v24 = vrsqrt.pop %v23
    %v25 = vmul.f32 %v15, %v24
    %v27 = vsel %vm19, %v25, 0
    %29 = vmatprep.subr.mxu0 0.0
    %30 = vmatpush1.xpose.msra.mxu0 %v27
    %31 = vmatprep.subr.mxu0 0.0
    %32 = vmatpush1.xpose.msra.mxu0 0.0
    %33 = vmatprep.subr.mxu0 0.0
    %34 = vmatpush1.xpose.msra.mxu0 0.0
    %35 = vmatprep.subr.mxu0 0.0
    %36 = vmatpush1.xpose.msra.mxu0 0.0
    %37 = vmatprep.subr.mxu0 0.0
    %38 = vmatpush1.xpose.msra.mxu0 0.0
    %39 = vmatprep.subr.mxu0 0.0
    %40 = vmatpush1.xpose.msra.mxu0 0.0
    %41 = vmatprep.subr.mxu0 0.0
    %42 = vmatpush1.xpose.msra.mxu0 0.0
    %43 = vmatprep.subr.mxu0 0.0
    %44 = vmatpush1.xpose.msra.mxu0 0.0
    %45 = vmatprep.subr.mxu0 0.0
    %46 = vmatpush1.xpose.msra.mxu0 0.0
    %47 = vmatprep.subr.mxu0 0.0
    %48 = vmatpush1.xpose.msra.mxu0 0.0
    %49 = vmatprep.subr.mxu0 0.0
    %50 = vmatpush1.xpose.msra.mxu0 0.0
    %51 = vmatprep.subr.mxu0 0.0
    %52 = vmatpush1.xpose.msra.mxu0 0.0
    %53 = vmatprep.subr.mxu0 0.0
    %54 = vmatpush1.xpose.msra.mxu0 0.0
    %55 = vmatprep.subr.mxu0 0.0
    %56 = vmatpush1.xpose.msra.mxu0 0.0
    %57 = vmatprep.subr.mxu0 0.0
    %58 = vmatpush1.xpose.msra.mxu0 0.0
    %59 = vmatprep.subr.mxu0 0.0
    %60 = vmatpush1.xpose.msra.mxu0 0.0
    %61 = vmatprep.subr.mxu0 0.0
    %62 = vmatpush1.xpose.msra.mxu0 0.0
    %63 = vmatprep.subr.mxu0 0.0
    %64 = vmatpush1.xpose.msra.mxu0 0.0
    %65 = vmatprep.subr.mxu0 0.0
    %66 = vmatpush1.xpose.msra.mxu0 0.0
    %67 = vmatprep.subr.mxu0 0.0
    %68 = vmatpush1.xpose.msra.mxu0 0.0
    %69 = vmatprep.subr.mxu0 0.0
    %70 = vmatpush1.xpose.msra.mxu0 0.0
    %71 = vmatprep.subr.mxu0 0.0
    %72 = vmatpush1.xpose.msra.mxu0 0.0
    %73 = vmatprep.subr.mxu0 0.0
    %74 = vmatpush1.xpose.msra.mxu0 0.0
    %75 = vmatprep.subr.mxu0 0.0
    %76 = vmatpush1.xpose.msra.mxu0 0.0
    %77 = vmatprep.subr.mxu0 0.0
    %78 = vmatpush1.xpose.msra.mxu0 0.0
    %79 = vmatprep.subr.mxu0 0.0
    %80 = vmatpush1.xpose.msra.mxu0 0.0
    %81 = vmatprep.subr.mxu0 0.0
    %82 = vmatpush1.xpose.msra.mxu0 0.0
    %83 = vmatprep.subr.mxu0 0.0
    %84 = vmatpush1.xpose.msra.mxu0 0.0
    %85 = vmatprep.subr.mxu0 0.0
    %86 = vmatpush1.xpose.msra.mxu0 0.0
    %87 = vmatprep.subr.mxu0 0.0
    %88 = vmatpush1.xpose.msra.mxu0 0.0
    %89 = vmatprep.subr.mxu0 0.0
    %90 = vmatpush1.xpose.msra.mxu0 0.0
    %91 = vmatprep.subr.mxu0 0.0
    %92 = vmatpush1.xpose.msra.mxu0 0.0
    %93 = vmatprep.mubr.f32.mxu0 0.0
    %94 = vmatmul.mubr.f32.gmra.mrb[0].mxu0 %v27
    %v95 = vpop.f32.mrb[0].mxu0
    %v96 = vadd.f32 0.0, %v95
    %v97 = vpop.f32.mrb[0].mxu0
    %98 = vdwg.mxu0
    %99 = vset.pattern.permute.xlu0 0
    %100 = vperm.xlu0 %99, %v16
    %v101 = vpop.permute.xlu0 %100
    %v102 = vlaneseq
    %v103 = vshrl.u32 %v102, 7
    %v104 = vsub.s32 0, %v103
    %v105 = vrot.slane %v17, %v104
    %vm106 = vcmp.eq.s32.totalorder %v101, %v105
    %v107 = vlaneseq
    %v108 = vshrl.u32 %v107, 7
    %v109 = vlaneseq
    %v110 = vand.u32 %v109, 127
    %vm111 = vcmp.eq.s32.totalorder %v108, %v110
    %vm112 = vmxor %vm111, 1
    %vm113 = vmand %vm106, %vm112
    %vm114 = vmxor %vm106, 1
    %v115 = vcvt.s32.f32 %v16
    %v116 = vcvt.s32.f32 %v17
    %118 = vset.pattern.permute.xlu0 0
    %119 = vperm.xlu0 %118, %v115
    %v120 = vpop.permute.xlu0 %119
    %v123 = vlaneseq
    %v124 = vshrl.u32 %v123, 7
    %v125 = vsub.s32 0, %v124
    %v126 = vrot.slane %v116, %v125
    %v128 = vsub.f32 %v120, %v126
    %v129 = vand.u32 2147483647, %v128
    %v130 = vmul.f32 %v129, 0.15
    %v131 = vadd.f32 %v130, %v96
    %v132 = vsel %vm114, %v131, -1e+30
    %v133 = vsel %vm113, %v96, 1e+30
    %135 = vset.pattern.permute.xlu0 0
    %136 = vperm.xlu0 %135, %v133
    %v137 = vpop.permute.xlu0 %136
    %v139 = vsub.f32 %v132, %v137
    %v140 = vmax.f32 %v139, 0.0
    %v141 = vadd.f32 %v140, 0.0
    %142 = vset.pattern.permute.xlu0 1
    %143 = vperm.xlu0 %142, %v133
    %v144 = vpop.permute.xlu0 %143
    %v146 = vsub.f32 %v132, %v144
    %v147 = vmax.f32 %v146, 0.0
    %v148 = vadd.f32 %v141, %v147
    %149 = vset.pattern.permute.xlu0 2
    %150 = vperm.xlu0 %149, %v133
    %v151 = vpop.permute.xlu0 %150
    %v153 = vsub.f32 %v132, %v151
    %v154 = vmax.f32 %v153, 0.0
    %v155 = vadd.f32 %v148, %v154
    %156 = vset.pattern.permute.xlu0 3
    %157 = vperm.xlu0 %156, %v133
    %v158 = vpop.permute.xlu0 %157
    %v160 = vsub.f32 %v132, %v158
    %v161 = vmax.f32 %v160, 0.0
    %v162 = vadd.f32 %v155, %v161
    %163 = vset.pattern.permute.xlu0 4
    %164 = vperm.xlu0 %163, %v133
    %v165 = vpop.permute.xlu0 %164
    %v167 = vsub.f32 %v132, %v165
    %v168 = vmax.f32 %v167, 0.0
    %v169 = vadd.f32 %v162, %v168
    %170 = vset.pattern.permute.xlu0 5
    %171 = vperm.xlu0 %170, %v133
    %v172 = vpop.permute.xlu0 %171
    %v174 = vsub.f32 %v132, %v172
    %v175 = vmax.f32 %v174, 0.0
    %v176 = vadd.f32 %v169, %v175
    %177 = vset.pattern.permute.xlu0 6
    %178 = vperm.xlu0 %177, %v133
    %v179 = vpop.permute.xlu0 %178
    %v181 = vsub.f32 %v132, %v179
    %v182 = vmax.f32 %v181, 0.0
    %v183 = vadd.f32 %v176, %v182
    %184 = vset.pattern.permute.xlu0 7
    %185 = vperm.xlu0 %184, %v133
    %v186 = vpop.permute.xlu0 %185
    %v188 = vsub.f32 %v132, %v186
    %v189 = vmax.f32 %v188, 0.0
    %v190 = vadd.f32 %v183, %v189
    %vm191 = vcmask 64512
    %v192 = vsel %vm191, %v190, 0.0
    %193 = vadd.xlane.f32.xlu0 %v192
    %v194 = vpop.xlane.xlu0 %193
    %v195 = vsel %vm113, 1, 0
    %v196 = vcvt.s32.f32 %v195
    %v197 = vsel %vm191, %v196, 0.0
    %198 = vadd.xlane.f32.xlu0 %v197
    %v199 = vpop.xlane.xlu0 %198
    %v200 = vsel %vm114, 1, 0
    %v201 = vcvt.s32.f32 %v200
    %v202 = vsel %vm191, %v201, 0.0
    %203 = vadd.xlane.f32.xlu0 %v202
    %v204 = vpop.xlane.xlu0 %203
    %vm205 = vcmp.gt.f32.partialorder %v199, 0.0
    %vm206 = vcmp.gt.f32.partialorder %v204, 0.0
    %vm207 = vmand %vm205, %vm206
    %v208 = vmul.f32 %v199, %v204
    %v209 = vmax.f32 %v208, 1.0
    %v210 = vrcp.pop %v209
    %v211 = vmul.f32 %v194, %v210
    %v212 = vsel %vm207, %v211, 0.0
    %v213 = vrot.slane %v212, 4
    %v214 = vadd.f32 %v212, %v213
    %v215 = vrot.slane %v214, 2
    %v216 = vadd.f32 %v214, %v215
    %v217 = vrot.slane %v216, 1
    %v218 = vadd.f32 %v216, %v217
    %v219 = vsel %vm207, 1, 0
    %v220 = vcvt.s32.f32 %v219
    %v221 = vrot.slane %v220, 4
    %v222 = vadd.f32 %v220, %v221
    %v223 = vrot.slane %v222, 2
    %v224 = vadd.f32 %v222, %v223
    %v225 = vrot.slane %v224, 1
    %v226 = vadd.f32 %v224, %v225
    %v227 = vmax.f32 %v226, 1.0
    %v228 = vrcp.pop %v227
    %v229 = vmul.f32 %v218, %v228
    %vm230 = vcmask 0
    %231 = vst.msk [vmem:[#allocation2] sm:$0x1] %vm230, %v229
    // Predicated region
    $region14: #{tpu_custom_call.1} parent=1 // pred_check
      _
    $region15: #{tpu_custom_call.1} parent=1 // pred_check_branch
      %233 = sbr.rel (0) target = $region17
    $region16: #{tpu_custom_call.1} parent=1 // pred_region
      %s235 = ssub.s32 16, 16
      %236 = vsyncadd [#allocation3], %s235
      %s238 = sshll.u32 [#allocation2], 4
      %s239 = int_to_ptr.vmem [resolvable:$true] %s238
      %241 = dma.vmem_to_hbm [thread:$0]  %s239, 16, %s3, [#allocation3]
    $region17: #{tpu_custom_call.1} parent=1 // pred_fallthru
      _
    // Predicated region
    $region18: #{tpu_custom_call.1} parent=1 // pred_check
      _
    $region19: #{tpu_custom_call.1} parent=1 // pred_check_branch
      %243 = sbr.rel (0) target = $region21
    $region20: #{tpu_custom_call.1} parent=1 // pred_region
      %244 = dma.done [#allocation3], 16
    $region21: #{tpu_custom_call.1} parent=1 // pred_fallthru
      _
    %245 = vsyncpa [#allocation3], 1

</llo_original>
